<compile_context>
chip_gen: v7x
topology: tpu7x:2x2x1
jax: 0.10.0
libtpu: 0.0.40
codegen_flags: <defaults>
</compile_context>

<pallas_src>
import jax
import jax.numpy as jnp
from jax import lax
from jax.experimental import pallas as pl
from jax.experimental.pallas import tpu as pltpu


def _masked_linear_kernel(x_ref, w_ref, mask_ref, o_ref, acc_ref):
    """One (tm, tn) output tile, accumulated over the In (k) grid axis."""
    k = pl.program_id(2)

    @pl.when(k == 0)
    def _():
        acc_ref[...] = jnp.zeros_like(acc_ref)

    # Elementwise masking of the (tn, tk) weight tile (VPU), fused with the
    # MXU matmul contracting the In axis of both operands (no transpose).
    w_eff = w_ref[...] * mask_ref[...]                          # (tn, tk)
    acc_ref[...] += lax.dot_general(
        x_ref[...],                                             # (tm, tk)
        w_eff,                                                  # (tn, tk)
        dimension_numbers=(((1,), (1,)), ((), ())),             # contract In
        preferred_element_type=jnp.float32,
    )                                                           # (tm, tn)

    @pl.when(k == pl.num_programs(2) - 1)
    def _():
        o_ref[...] = acc_ref[...].astype(o_ref.dtype)


def _round_up(v, m):
    return ((v + m - 1) // m) * m


def masked_connected_forward(x, W, W_mask, connectivity_mask):
    """output = x @ (W * W_mask * connectivity_mask).T via a Pallas kernel."""
    B, In = x.shape
    Out, In_w = W.shape
    assert In == In_w, "weight / input feature mismatch"

    x = x.astype(jnp.float32)
    W = W.astype(jnp.float32)
    # Fold the two masks once on the host side: one mask stream instead of two.
    combined_mask = (W_mask * connectivity_mask).astype(jnp.float32)

    # Tile sizes: tm covers the (typically small) batch in one tile so each
    # weight+mask tile is fetched and masked exactly once; tn/tk are 128-
    # aligned (lane-dense output / MXU-friendly), capped to keep double-
    # buffered VMEM usage small on every chip generation.
    tm = min(_round_up(B, 8), 256)
    tn = min(_round_up(Out, 128), 256)
    tk = min(_round_up(In, 128), 512)

    Bp = _round_up(B, tm)
    Outp = _round_up(Out, tn)
    Inp = _round_up(In, tk)

    x_p = jnp.pad(x, ((0, Bp - B), (0, Inp - In)))
    w_p = jnp.pad(W, ((0, Outp - Out), (0, Inp - In)))
    m_p = jnp.pad(combined_mask, ((0, Outp - Out), (0, Inp - In)))

    grid = (Bp // tm, Outp // tn, Inp // tk)

    out_p = pl.pallas_call(
        _masked_linear_kernel,
        out_shape=jax.ShapeDtypeStruct((Bp, Outp), jnp.float32),
        grid=grid,
        in_specs=[
            pl.BlockSpec((tm, tk), lambda i, j, k: (i, k)),     # x
            pl.BlockSpec((tn, tk), lambda i, j, k: (j, k)),     # W
            pl.BlockSpec((tn, tk), lambda i, j, k: (j, k)),     # combined mask
        ],
        out_specs=pl.BlockSpec((tm, tn), lambda i, j, k: (i, j)),
        scratch_shapes=[pltpu.VMEM((tm, tn), jnp.float32)],
        compiler_params=pltpu.CompilerParams(
            dimension_semantics=("parallel", "parallel", "arbitrary"),
            vmem_limit_bytes=32 * 1024 * 1024,
        ),
    )(x_p, w_p, m_p)

    return out_p[:B, :Out]


if __name__ == "__main__":
    # Small shapes implied by the module: a plain (batch, features) linear map.
    batch, input_size, output_size = 8, 32, 16

    key = jax.random.PRNGKey(0)
    k_x, k_w, k_conn = jax.random.split(key, 3)

    # Input
    x = jax.random.normal(k_x, (batch, input_size), dtype=jnp.float32)

    # Deterministic parameter init (mirrors default path: kaiming_normal_ for
    # 'linear' nonlinearity => std = 1/sqrt(fan_in); bias unused in forward).
    std = 1.0 / jnp.sqrt(jnp.float32(input_size))
    W = std * jax.random.normal(k_w, (output_size, input_size), dtype=jnp.float32)

    # connectivity_mask: deterministic binary sparsity pattern.
    connectivity_mask = (
        jax.random.uniform(k_conn, (output_size, input_size)) > 0.5
    ).astype(jnp.float32)

    # W_mask starts as ones, then multiplied by connectivity_mask in __init__.
    W_mask = jnp.ones((output_size, input_size), dtype=jnp.float32) * connectivity_mask

    out = masked_connected_forward(x, W, W_mask, connectivity_mask)
    out = jax.block_until_ready(out)

    # Pure-JAX reference check (matches the PyTorch forward exactly).
    ref = x @ (W * W_mask * connectivity_mask).T
    assert out.shape == (batch, output_size)
    assert jnp.allclose(out, ref, atol=1e-5, rtol=1e-5)

    print("KERNEL_OK")
</pallas_src>

<mosaic_0001>
module attributes {stable_mosaic.version = 11 : i64} {
  func.func @_masked_linear_kernel(%arg0: i32, %arg1: i32, %arg2: i32, %arg3: memref<8x128xf32, #tpu.memory_space<vmem>>, %arg4: memref<128x128xf32, #tpu.memory_space<vmem>>, %arg5: memref<128x128xf32, #tpu.memory_space<vmem>>, %arg6: memref<8x128xf32, #tpu.memory_space<vmem>>, %arg7: memref<8x128xf32, #tpu.memory_space<vmem>>) attributes {dimension_semantics = [#tpu.dimension_semantics<parallel>, #tpu.dimension_semantics<parallel>, #tpu.dimension_semantics<arbitrary>], iteration_bounds = array<i64: 1, 1, 1>, scalar_prefetch = 0 : i64, scratch_operands = 1 : i64, tpu.core_type = #tpu.core_type<tc>, window_params = [{transform_indices = @transform_0, window_bounds = array<i64: 8, 128>}, {transform_indices = @transform_1, window_bounds = array<i64: 128, 128>}, {transform_indices = @transform_2, window_bounds = array<i64: 128, 128>}, {transform_indices = @transform_3, window_bounds = array<i64: 8, 128>}]} {
    %c0_i32 = arith.constant 0 : i32
    %0 = arith.cmpi eq, %arg2, %c0_i32 : i32
    %1 = arith.extui %0 : i1 to i32
    %c0_i32_0 = arith.constant 0 : i32
    %2 = arith.cmpi ne, %1, %c0_i32_0 : i32
    scf.if %2 {
      %cst_12 = arith.constant 0.000000e+00 : f32
      %14 = vector.broadcast %cst_12 : f32 to vector<8x128xf32>
      %c0_13 = arith.constant 0 : index
      %c0_14 = arith.constant 0 : index
      %15 = vector.load %arg7[%c0_13, %c0_14] : memref<8x128xf32, #tpu.memory_space<vmem>>, vector<8x128xf32>
      tpu.vector_store %arg7[%c0_13, %c0_14], %14 {strides = array<i32>} : memref<8x128xf32, #tpu.memory_space<vmem>>, vector<8x128xf32>,
    } else {
    }
    %c0 = arith.constant 0 : index
    %c0_1 = arith.constant 0 : index
    %3 = vector.load %arg4[%c0, %c0_1] : memref<128x128xf32, #tpu.memory_space<vmem>>, vector<128x128xf32>
    %c0_2 = arith.constant 0 : index
    %c0_3 = arith.constant 0 : index
    %4 = vector.load %arg5[%c0_2, %c0_3] : memref<128x128xf32, #tpu.memory_space<vmem>>, vector<128x128xf32>
    %5 = arith.mulf %3, %4 : vector<128x128xf32>
    %c0_4 = arith.constant 0 : index
    %c0_5 = arith.constant 0 : index
    %6 = vector.load %arg7[%c0_4, %c0_5] : memref<8x128xf32, #tpu.memory_space<vmem>>, vector<8x128xf32>
    %c0_6 = arith.constant 0 : index
    %c0_7 = arith.constant 0 : index
    %7 = vector.load %arg3[%c0_6, %c0_7] : memref<8x128xf32, #tpu.memory_space<vmem>>, vector<8x128xf32>
    %cst = arith.constant dense<0.000000e+00> : vector<8x128xf32>
    %8 = tpu.matmul %7, %5, %cst {dimension_numbers = #tpu.dot_dimension_numbers<[1], [1], [0], [0], [0, 0, 1, 0], [], []>} : vector<8x128xf32>, vector<128x128xf32>, vector<8x128xf32> -> vector<8x128xf32>
    %9 = arith.addf %6, %8 : vector<8x128xf32>
    %c0_8 = arith.constant 0 : index
    %c0_9 = arith.constant 0 : index
    %10 = vector.load %arg7[%c0_8, %c0_9] : memref<8x128xf32, #tpu.memory_space<vmem>>, vector<8x128xf32>
    tpu.vector_store %arg7[%c0_8, %c0_9], %9 {strides = array<i32>} : memref<8x128xf32, #tpu.memory_space<vmem>>, vector<8x128xf32>,
    %c0_i32_10 = arith.constant 0 : i32
    %11 = arith.cmpi eq, %arg2, %c0_i32_10 : i32
    %12 = arith.extui %11 : i1 to i32
    %c0_i32_11 = arith.constant 0 : i32
    %13 = arith.cmpi ne, %12, %c0_i32_11 : i32
    scf.if %13 {
      %c0_12 = arith.constant 0 : index
      %c0_13 = arith.constant 0 : index
      %14 = vector.load %arg7[%c0_12, %c0_13] : memref<8x128xf32, #tpu.memory_space<vmem>>, vector<8x128xf32>
      %c0_14 = arith.constant 0 : index
      %c0_15 = arith.constant 0 : index
      %15 = vector.load %arg6[%c0_14, %c0_15] : memref<8x128xf32, #tpu.memory_space<vmem>>, vector<8x128xf32>
      tpu.vector_store %arg6[%c0_14, %c0_15], %14 {strides = array<i32>} : memref<8x128xf32, #tpu.memory_space<vmem>>, vector<8x128xf32>,
    } else {
    }
    return
  }
  func.func @transform_0(%arg0: i32, %arg1: i32, %arg2: i32) -> (i32, i32) {
    %c0_i32 = arith.constant 0 : i32
    return %arg0, %arg2 : i32, i32
  }
  func.func @transform_1(%arg0: i32, %arg1: i32, %arg2: i32) -> (i32, i32) {
    %c0_i32 = arith.constant 0 : i32
    return %arg1, %arg2 : i32, i32
  }
  func.func @transform_2(%arg0: i32, %arg1: i32, %arg2: i32) -> (i32, i32) {
    %c0_i32 = arith.constant 0 : i32
    return %arg1, %arg2 : i32, i32
  }
  func.func @transform_3(%arg0: i32, %arg1: i32, %arg2: i32) -> (i32, i32) {
    %c0_i32 = arith.constant 0 : i32
    return %arg0, %arg1 : i32, i32
  }
}

</mosaic_0001>

<llo_original>
// kernel: tpu_custom_call.1
$region0: #{tpu_custom_call.1}
  #allocation0 [shape = 'u32[]', space=smem, size = 0x4, offset = 0x4, fixed_abs, tag = 'smem constant byte address 0x4 - core index']
  #allocation1 [shape = 'u32[144,128]{1,0:T(1,128)}', space=vmem, size = 0x12000, scoped, tag = 'internal scratch']
  #allocation2 [shape = 'f32[8,128]{1,0:T(8,128)}', space=vmem, size = 0x1000, scoped, tag = 'scratch operand']
  %s0 = inlined_call_operand.hbm [shape: f32[8,128], index: 0, kind: input, shape index: {}]
  %s1 = inlined_call_operand.hbm [shape: f32[128,128], index: 1, kind: input, shape index: {}]
  %s2 = inlined_call_operand.hbm [shape: f32[128,128], index: 2, kind: input, shape index: {}]
  %s3 = inlined_call_operand.hbm [shape: f32[8,128], index: 3, kind: output, shape index: {}]
  %s4 = sld [smem:[#allocation0]]
  $region42: #{tpu_custom_call.1} parent=0
    _
  %s6 = ssub.s32 1, %s4
  %s7 = scalar_select 0, %s6, %s4
  $region1: #{tpu_custom_call.1} parent=0
    #allocation3 [shape = 'u8[4096]{0}', space=vmem, size = 0x1000, scoped, tag = 'input window, operand 0, single buffered']
    #allocation4 [shape = 's32[1]{0}', space=sflag, size = 0x4, scoped, tag = 'scoped memory for tpu_custom_call.1']
    #allocation5 [shape = 's32[1]{0}', space=sflag, size = 0x4, scoped, tag = 'scoped memory for tpu_custom_call.1']
    #allocation6 [shape = 'u8[65536]{0}', space=vmem, size = 0x10000, scoped, tag = 'input window, operand 1, single buffered']
    #allocation7 [shape = 's32[1]{0}', space=sflag, size = 0x4, scoped, tag = 'scoped memory for tpu_custom_call.1']
    #allocation8 [shape = 'u8[65536]{0}', space=vmem, size = 0x10000, scoped, tag = 'input window, operand 2, single buffered']
    #allocation9 [shape = 'u8[4096]{0}', space=vmem, size = 0x1000, scoped, tag = 'output window, operand 0, single buffered']
    %8 = vsyncpa [#allocation4], 0
    %9 = vsyncpa [#allocation7], 0
    %10 = vsyncpa [#allocation5], 0
    // Predicated region
    $region2: #{tpu_custom_call.1} parent=1 // pred_check
      _
    $region3: #{tpu_custom_call.1} parent=1 // pred_check_branch
      %12 = sbr.rel (0) target = $region5
    $region4: #{tpu_custom_call.1} parent=1 // pred_region
      %s14 = ssub.s32 128, 128
      %15 = vsyncadd [#allocation4], %s14
      %s17 = sshll.u32 [#allocation3], 4
      %s18 = int_to_ptr.vmem [resolvable:$true] %s17
      %20 = dma.hbm_to_vmem [thread:$0]  %s0, 128, %s18, [#allocation4]
    $region5: #{tpu_custom_call.1} parent=1 // pred_fallthru
      _
    // Predicated region
    $region6: #{tpu_custom_call.1} parent=1 // pred_check
      _
    $region7: #{tpu_custom_call.1} parent=1 // pred_check_branch
      %22 = sbr.rel (0) target = $region9
    $region8: #{tpu_custom_call.1} parent=1 // pred_region
      %s24 = ssub.s32 2048, 2048
      %25 = vsyncadd [#allocation7], %s24
      %s26 = sshll.u32 [#allocation6], 4
      %s27 = int_to_ptr.vmem [resolvable:$true] %s26
      %32 = dma.hbm_to_vmem [thread:$0]  %s1, 2048, %s27, [#allocation7], 128, 128, 8
    $region9: #{tpu_custom_call.1} parent=1 // pred_fallthru
      _
    // Predicated region
    $region10: #{tpu_custom_call.1} parent=1 // pred_check
      _
    $region11: #{tpu_custom_call.1} parent=1 // pred_check_branch
      %34 = sbr.rel (0) target = $region13
    $region12: #{tpu_custom_call.1} parent=1 // pred_region
      %s36 = ssub.s32 2048, 2048
      %37 = vsyncadd [#allocation7], %s36
      %s38 = sshll.u32 [#allocation8], 4
      %s39 = int_to_ptr.vmem [resolvable:$true] %s38
      %44 = dma.hbm_to_vmem [thread:$0]  %s2, 2048, %s39, [#allocation7], 128, 128, 8
    $region13: #{tpu_custom_call.1} parent=1 // pred_fallthru
      _
    // Predicated region
    $region14: #{tpu_custom_call.1} parent=1 // pred_check
      _
    $region15: #{tpu_custom_call.1} parent=1 // pred_check_branch
      %46 = sbr.rel (0) target = $region17
    $region16: #{tpu_custom_call.1} parent=1 // pred_region
      %47 = dma.done [#allocation4], 128
    $region17: #{tpu_custom_call.1} parent=1 // pred_fallthru
      _
    // Predicated region
    $region18: #{tpu_custom_call.1} parent=1 // pred_check
      _
    $region19: #{tpu_custom_call.1} parent=1 // pred_check_branch
      %49 = sbr.rel (0) target = $region21
    $region20: #{tpu_custom_call.1} parent=1 // pred_region
      %50 = dma.done [#allocation7], 2048
    $region21: #{tpu_custom_call.1} parent=1 // pred_fallthru
      _
    // Predicated region
    $region22: #{tpu_custom_call.1} parent=1 // pred_check
      _
    $region23: #{tpu_custom_call.1} parent=1 // pred_check_branch
      %52 = sbr.rel (0) target = $region25
    $region24: #{tpu_custom_call.1} parent=1 // pred_region
      %53 = dma.done [#allocation7], 2048
    $region25: #{tpu_custom_call.1} parent=1 // pred_fallthru
      _
    %p54 = scmp.eq.s32.totalorder 0, 0
    // Predicated region
    $region26: #{tpu_custom_call.1} parent=1 // pred_check
      %p55 = pneg %p54
    $region27: #{tpu_custom_call.1} parent=1 // pred_check_branch
      %57 = sbr.rel (%p55) target = $region29
    $region28: #{tpu_custom_call.1} parent=1 // pred_region
      %58 = vst [vmem:[#allocation2] sm:$0xff] 0.0
    $region29: #{tpu_custom_call.1} parent=1 // pred_fallthru
      _
    %v59 = vld [vmem:[#allocation6] sm:$0xff]
    %v60 = vld [vmem:[#allocation6 + $0x8] sm:$0xff]
    %v61 = vld [vmem:[#allocation6 + $0x10] sm:$0xff]
    %v62 = vld [vmem:[#allocation6 + $0x18] sm:$0xff]
    %v63 = vld [vmem:[#allocation6 + $0x20] sm:$0xff]
    %v64 = vld [vmem:[#allocation6 + $0x28] sm:$0xff]
    %v65 = vld [vmem:[#allocation6 + $0x30] sm:$0xff]
    %v66 = vld [vmem:[#allocation6 + $0x38] sm:$0xff]
    %v67 = vld [vmem:[#allocation6 + $0x40] sm:$0xff]
    %v68 = vld [vmem:[#allocation6 + $0x48] sm:$0xff]
    %v69 = vld [vmem:[#allocation6 + $0x50] sm:$0xff]
    %v70 = vld [vmem:[#allocation6 + $0x58] sm:$0xff]
    %v71 = vld [vmem:[#allocation6 + $0x60] sm:$0xff]
    %v72 = vld [vmem:[#allocation6 + $0x68] sm:$0xff]
    %v73 = vld [vmem:[#allocation6 + $0x70] sm:$0xff]
    %v74 = vld [vmem:[#allocation6 + $0x78] sm:$0xff]
    %v75 = vld [vmem:[#allocation8] sm:$0xff]
    %v76 = vld [vmem:[#allocation8 + $0x8] sm:$0xff]
    %v77 = vld [vmem:[#allocation8 + $0x10] sm:$0xff]
    %v78 = vld [vmem:[#allocation8 + $0x18] sm:$0xff]
    %v79 = vld [vmem:[#allocation8 + $0x20] sm:$0xff]
    %v80 = vld [vmem:[#allocation8 + $0x28] sm:$0xff]
    %v81 = vld [vmem:[#allocation8 + $0x30] sm:$0xff]
    %v82 = vld [vmem:[#allocation8 + $0x38] sm:$0xff]
    %v83 = vld [vmem:[#allocation8 + $0x40] sm:$0xff]
    %v84 = vld [vmem:[#allocation8 + $0x48] sm:$0xff]
    %v85 = vld [vmem:[#allocation8 + $0x50] sm:$0xff]
    %v86 = vld [vmem:[#allocation8 + $0x58] sm:$0xff]
    %v87 = vld [vmem:[#allocation8 + $0x60] sm:$0xff]
    %v88 = vld [vmem:[#allocation8 + $0x68] sm:$0xff]
    %v89 = vld [vmem:[#allocation8 + $0x70] sm:$0xff]
    %v90 = vld [vmem:[#allocation8 + $0x78] sm:$0xff]
    %v91 = vmul.f32 %v59, %v75
    %v92 = vmul.f32 %v60, %v76
    %v93 = vmul.f32 %v61, %v77
    %v94 = vmul.f32 %v62, %v78
    %v95 = vmul.f32 %v63, %v79
    %v96 = vmul.f32 %v64, %v80
    %v97 = vmul.f32 %v65, %v81
    %v98 = vmul.f32 %v66, %v82
    %v99 = vmul.f32 %v67, %v83
    %v100 = vmul.f32 %v68, %v84
    %v101 = vmul.f32 %v69, %v85
    %v102 = vmul.f32 %v70, %v86
    %v103 = vmul.f32 %v71, %v87
    %v104 = vmul.f32 %v72, %v88
    %v105 = vmul.f32 %v73, %v89
    %v106 = vmul.f32 %v74, %v90
    %v107 = vld [vmem:[#allocation2] sm:$0xff]
    %v108 = vld [vmem:[#allocation3] sm:$0xff]
    %109 = vmatprep.subr.mxu0 0.0
    %110 = vmatpush1.xpose.msra.mxu0 %v91
    %111 = vmatprep.subr.mxu0 0.0
    %112 = vmatpush1.xpose.msra.mxu0 %v92
    %113 = vmatprep.subr.mxu0 0.0
    %114 = vmatpush1.xpose.msra.mxu0 %v93
    %115 = vmatprep.subr.mxu0 0.0
    %116 = vmatpush1.xpose.msra.mxu0 %v94
    %117 = vmatprep.subr.mxu0 0.0
    %118 = vmatpush1.xpose.msra.mxu0 %v95
    %119 = vmatprep.subr.mxu0 0.0
    %120 = vmatpush1.xpose.msra.mxu0 %v96
    %121 = vmatprep.subr.mxu0 0.0
    %122 = vmatpush1.xpose.msra.mxu0 %v97
    %123 = vmatprep.subr.mxu0 0.0
    %124 = vmatpush1.xpose.msra.mxu0 %v98
    %125 = vmatprep.subr.mxu0 0.0
    %126 = vmatpush1.xpose.msra.mxu0 %v99
    %127 = vmatprep.subr.mxu0 0.0
    %128 = vmatpush1.xpose.msra.mxu0 %v100
    %129 = vmatprep.subr.mxu0 0.0
    %130 = vmatpush1.xpose.msra.mxu0 %v101
    %131 = vmatprep.subr.mxu0 0.0
    %132 = vmatpush1.xpose.msra.mxu0 %v102
    %133 = vmatprep.subr.mxu0 0.0
    %134 = vmatpush1.xpose.msra.mxu0 %v103
    %135 = vmatprep.subr.mxu0 0.0
    %136 = vmatpush1.xpose.msra.mxu0 %v104
    %137 = vmatprep.subr.mxu0 0.0
    %138 = vmatpush1.xpose.msra.mxu0 %v105
    %139 = vmatprep.subr.mxu0 0.0
    %140 = vmatpush1.xpose.msra.mxu0 %v106
    %141 = vmatprep.subr.mxu0 0.0
    %142 = vmatpush1.xpose.msra.mxu0 0.0
    %143 = vmatprep.subr.mxu0 0.0
    %144 = vmatpush1.xpose.msra.mxu0 0.0
    %145 = vmatprep.subr.mxu0 0.0
    %146 = vmatpush1.xpose.msra.mxu0 0.0
    %147 = vmatprep.subr.mxu0 0.0
    %148 = vmatpush1.xpose.msra.mxu0 0.0
    %149 = vmatprep.subr.mxu0 0.0
    %150 = vmatpush1.xpose.msra.mxu0 0.0
    %151 = vmatprep.subr.mxu0 0.0
    %152 = vmatpush1.xpose.msra.mxu0 0.0
    %153 = vmatprep.subr.mxu0 0.0
    %154 = vmatpush1.xpose.msra.mxu0 0.0
    %155 = vmatprep.subr.mxu0 0.0
    %156 = vmatpush1.xpose.msra.mxu0 0.0
    %157 = vmatprep.subr.mxu0 0.0
    %158 = vmatpush1.xpose.msra.mxu0 0.0
    %159 = vmatprep.subr.mxu0 0.0
    %160 = vmatpush1.xpose.msra.mxu0 0.0
    %161 = vmatprep.subr.mxu0 0.0
    %162 = vmatpush1.xpose.msra.mxu0 0.0
    %163 = vmatprep.subr.mxu0 0.0
    %164 = vmatpush1.xpose.msra.mxu0 0.0
    %165 = vmatprep.subr.mxu0 0.0
    %166 = vmatpush1.xpose.msra.mxu0 0.0
    %167 = vmatprep.subr.mxu0 0.0
    %168 = vmatpush1.xpose.msra.mxu0 0.0
    %169 = vmatprep.subr.mxu0 0.0
    %170 = vmatpush1.xpose.msra.mxu0 0.0
    %171 = vmatprep.subr.mxu0 0.0
    %172 = vmatpush1.xpose.msra.mxu0 0.0
    %173 = vmatprep.mubr.f32.mxu0 0.0
    %174 = vmatmul.mubr.f32.gmra.mrb[0].mxu0 %v108
    %v175 = vpop.f32.mrb[0].mxu0
    %v176 = vadd.f32 0.0, %v175
    %v177 = vpop.f32.mrb[0].mxu0
    %178 = vdwg.mxu0
    %v179 = vadd.f32 %v107, %v176
    %180 = vst [vmem:[#allocation2] sm:$0xff] %v179
    // Predicated region
    $region30: #{tpu_custom_call.1} parent=1 // pred_check
      %p181 = pneg %p54
    $region31: #{tpu_custom_call.1} parent=1 // pred_check_branch
      %183 = sbr.rel (%p181) target = $region33
    $region32: #{tpu_custom_call.1} parent=1 // pred_region
      %v184 = vld [vmem:[#allocation2] sm:$0xff]
      %185 = vst [vmem:[#allocation9] sm:$0xff] %v184
    $region33: #{tpu_custom_call.1} parent=1 // pred_fallthru
      _
    // Predicated region
    $region34: #{tpu_custom_call.1} parent=1 // pred_check
      _
    $region35: #{tpu_custom_call.1} parent=1 // pred_check_branch
      %187 = sbr.rel (0) target = $region37
    $region36: #{tpu_custom_call.1} parent=1 // pred_region
      %s189 = ssub.s32 128, 128
      %190 = vsyncadd [#allocation5], %s189
      %s192 = sshll.u32 [#allocation9], 4
      %s193 = int_to_ptr.vmem [resolvable:$true] %s192
      %195 = dma.vmem_to_hbm [thread:$0]  %s193, 128, %s3, [#allocation5]
    $region37: #{tpu_custom_call.1} parent=1 // pred_fallthru
      _
    // Predicated region
    $region38: #{tpu_custom_call.1} parent=1 // pred_check
      _
    $region39: #{tpu_custom_call.1} parent=1 // pred_check_branch
      %197 = sbr.rel (0) target = $region41
    $region40: #{tpu_custom_call.1} parent=1 // pred_region
      %198 = dma.done [#allocation5], 128
    $region41: #{tpu_custom_call.1} parent=1 // pred_fallthru
      _
    %199 = vsyncpa [#allocation4], 1
    %200 = vsyncpa [#allocation7], 1
    %201 = vsyncpa [#allocation5], 1

</llo_original>
